<compile_context>
chip_gen: v7x
topology: tpu7x:2x2x1
jax: 0.10.0
libtpu: 0.0.40
codegen_flags: <defaults>
</compile_context>

<pallas_src>
import jax
import jax.numpy as jnp
from jax.experimental import pallas as pl
from jax.experimental.pallas import tpu as pltpu


def _pick_tile(n, target):
    """Largest divisor of n that is <= target (exact grids, no masking needed)."""
    t = max(1, min(n, target))
    while n % t:
        t -= 1
    return t


# ----------------------------------------------------------------------------
# ConvTranspose2d(kernel=2, stride=2): every input pixel emits a disjoint 2x2
# block.  Grid = (batch, input_row, cout_tile); the kernel writes the two output
# rows 2h and 2h+1 directly interleaved (no XLA transpose pass afterwards).
# ----------------------------------------------------------------------------
def upsample_convtranspose2x2(x_nhwc, up_w, up_b, *, out_dtype, cout_tile=128):
    B, H, W, Ci = x_nhwc.shape
    Co = int(up_w.shape[1])
    cot = _pick_tile(Co, cout_tile)
    n_ct = Co // cot

    # torch layout (Ci, Co, kh, kw) -> (kh, kw, Ci, Co); cast operands to compute dtype
    w_kkio = jnp.transpose(up_w, (2, 3, 0, 1)).astype(x_nhwc.dtype)
    bias = up_b.astype(jnp.float32).reshape(1, Co)

    def kernel(x_ref, w_ref, b_ref, o_ref):
        x = x_ref[0, 0]                          # (W, Ci)
        bias_t = b_ref[...]                      # (1, cot) f32
        for a in range(2):                       # output row 2h + a
            y0 = jnp.dot(x, w_ref[a, 0], preferred_element_type=jnp.float32)  # kw=0
            y1 = jnp.dot(x, w_ref[a, 1], preferred_element_type=jnp.float32)  # kw=1
            # interleave along width: out[2w+kw, o]  (stack on a new sublane axis,
            # then a contiguous leading-dim collapse)
            row = jnp.concatenate([y0[:, None, :], y1[:, None, :]], axis=1)
            row = row.reshape(2 * W, cot) + bias_t
            o_ref[0, a] = row.astype(o_ref.dtype)

    return pl.pallas_call(
        kernel,
        out_shape=jax.ShapeDtypeStruct((B, 2 * H, 2 * W, Co), out_dtype),
        grid=(B, H, n_ct),
        in_specs=[
            pl.BlockSpec((1, 1, W, Ci), lambda b, h, c: (b, h, 0, 0)),
            pl.BlockSpec((2, 2, Ci, cot), lambda b, h, c: (0, 0, 0, c)),
            pl.BlockSpec((1, cot), lambda b, h, c: (0, c)),
        ],
        out_specs=pl.BlockSpec((1, 2, 2 * W, cot), lambda b, h, c: (b, h, 0, c)),
        compiler_params=pltpu.CompilerParams(
            dimension_semantics=("parallel", "parallel", "parallel"),
            vmem_limit_bytes=64 * 1024 * 1024),
    )(x_nhwc, w_kkio, bias)


# ----------------------------------------------------------------------------
# 3x3 conv (pad=1) + bias over the *virtual* channel-concat of `inputs`,
# with fused BatchNorm partial statistics and an optional fused
# "BN+ReLU of the previous block" prologue applied to the input tiles.
#
# Grid = (batch, row_tile, cout_tile).  Activations are passed as raw HBM refs
# (memory_space=pl.ANY) and the (row_tile + 2)-row halo window is DMA'd manually,
# so spatial tiling with a 1-row halo works at any resolution / VMEM budget.
# ----------------------------------------------------------------------------
def conv3x3_bias_bnstats(inputs, w_oihw, bias, *,
                         prologue_scale=None, prologue_shift=None,
                         out_dtype, row_tile=8, cout_tile=128):
    B, H, W, _ = inputs[0].shape
    dt = inputs[0].dtype
    cins = tuple(int(x.shape[-1]) for x in inputs)
    cin_total = sum(cins)
    cout = int(w_oihw.shape[0])
    assert int(w_oihw.shape[1]) == cin_total
    th = _pick_tile(H, row_tile)
    cot = _pick_tile(cout, cout_tile)
    n_rt, n_ct = H // th, cout // cot
    n_in = len(inputs)
    prologue = prologue_scale is not None

    # 1-pixel zero halo.  For the prologue (pre-BN raw input) the kernel re-zeroes
    # the ring after the affine+ReLU so padding semantics match Conv2d(padding=1).
    xpads = [jnp.pad(x, ((0, 0), (1, 1), (1, 1), (0, 0))) for x in inputs]

    # weights: OIHW -> (kh, kw, I, O); split the input-channel axis per input tensor
    w_hwio = jnp.transpose(w_oihw, (2, 3, 1, 0))
    w_parts, off = [], 0
    for ci in cins:
        w_parts.append(w_hwio[:, :, off:off + ci, :].astype(dt))   # (3, 3, ci, cout)
        off += ci
    bias2 = bias.astype(jnp.float32).reshape(1, cout)

    def kernel(*refs):
        i = 0
        x_hbm = refs[i:i + n_in]; i += n_in
        if prologue:
            scale_ref, shift_ref = refs[i], refs[i + 1]; i += 2
        w_refs = refs[i:i + n_in]; i += n_in
        b_ref = refs[i]; i += 1
        y_ref, sum_ref, ssq_ref = refs[i:i + 3]; i += 3
        xbufs = refs[i:i + n_in]; i += n_in
        sem = refs[i]

        b = pl.program_id(0)
        r = pl.program_id(1)
        row0 = r * th                       # first padded row of this tile's halo window

        # 1) manual DMA of the (th+2)-row haloed windows (pl.ANY inputs => no auto copy)
        copies = [pltpu.make_async_copy(x_hbm[k].at[b, pl.ds(row0, th + 2)],
                                        xbufs[k], sem.at[k]) for k in range(n_in)]
        for cp in copies:
            cp.start()
        for cp in copies:
            cp.wait()
        # TODO(synk): double-buffer these window DMAs across grid steps (prefetch the
        # next row tile) to restore the input/compute overlap of BlockSpec pipelining.

        # 2) bounded f32 accumulator: one (row_tile, W, cout_tile) tile
        acc = jnp.zeros((th, W, cot), jnp.float32)
        c_off = 0
        for k in range(n_in):
            ci = cins[k]
            x = xbufs[k][...]                                  # (th+2, W+2, ci)
            if prologue:
                # fused BN+ReLU of the previous ConvBlock, applied in VMEM
                sc = scale_ref[...][:, c_off:c_off + ci].reshape(1, 1, ci)
                sh = shift_ref[...][:, c_off:c_off + ci].reshape(1, 1, ci)
                act = jnp.maximum(x.astype(jnp.float32) * sc + sh, 0.0)
                # the halo ring holds raw zero padding: re-zero it after the affine
                rows = jax.lax.broadcasted_iota(jnp.int32, (th + 2, W + 2, ci), 0) + row0
                cols = jax.lax.broadcasted_iota(jnp.int32, (th + 2, W + 2, ci), 1)
                ring = (rows < 1) | (rows > H) | (cols < 1) | (cols > W)
                x = jnp.where(ring, 0.0, act).astype(dt)
            # 3x3 conv as 9 MXU taps: per dy contract the full-width row slab once
            # and apply the dx shift to the narrow (cout_tile-wide) result, instead
            # of im2col-copying the (Cin-wide) input for every tap.
            for dy in range(3):
                xs = x[dy:dy + th].reshape(th * (W + 2), ci)
                for dx in range(3):
                    yf = jnp.dot(xs, w_refs[k][dy, dx],
                                 preferred_element_type=jnp.float32)
                    acc = acc + yf.reshape(th, W + 2, cot)[:, dx:dx + W, :]
            c_off += ci
        acc = acc + b_ref[...].reshape(1, 1, cot)

        # 3) fused BatchNorm partial statistics for this (batch, row-tile, cout-tile)
        sum_ref[0, 0] = jnp.sum(jnp.sum(acc, axis=1), axis=0, keepdims=True)
        ssq_ref[0, 0] = jnp.sum(jnp.sum(acc * acc, axis=1), axis=0, keepdims=True)

        # 4) raw (pre-BN) conv output tile, lane-dense in the cout tile
        y_ref[0] = acc.astype(y_ref.dtype)

    in_specs = [pl.BlockSpec(memory_space=pl.ANY) for _ in range(n_in)]
    call_args = list(xpads)
    if prologue:
        in_specs += [pl.BlockSpec((1, cin_total), lambda b, r, c: (0, 0)),
                     pl.BlockSpec((1, cin_total), lambda b, r, c: (0, 0))]
        call_args += [prologue_scale.astype(jnp.float32).reshape(1, cin_total),
                      prologue_shift.astype(jnp.float32).reshape(1, cin_total)]
    for ci in cins:
        in_specs.append(pl.BlockSpec((3, 3, ci, cot), lambda b, r, c: (0, 0, 0, c)))
    in_specs.append(pl.BlockSpec((1, cot), lambda b, r, c: (0, c)))
    call_args += w_parts + [bias2]

    out_shape = (jax.ShapeDtypeStruct((B, H, W, cout), out_dtype),
                 jax.ShapeDtypeStruct((B, n_rt, 1, cout), jnp.float32),
                 jax.ShapeDtypeStruct((B, n_rt, 1, cout), jnp.float32))
    out_specs = (pl.BlockSpec((1, th, W, cot), lambda b, r, c: (b, r, 0, c)),
                 pl.BlockSpec((1, 1, 1, cot), lambda b, r, c: (b, r, 0, c)),
                 pl.BlockSpec((1, 1, 1, cot), lambda b, r, c: (b, r, 0, c)))

    scratch_shapes = ([pltpu.VMEM((th + 2, W + 2, ci), dt) for ci in cins]
                      + [pltpu.SemaphoreType.DMA((n_in,))])

    y, sums, ssqs = pl.pallas_call(
        kernel,
        out_shape=out_shape,
        grid=(B, n_rt, n_ct),
        in_specs=in_specs,
        out_specs=out_specs,
        scratch_shapes=scratch_shapes,
        compiler_params=pltpu.CompilerParams(
            dimension_semantics=("parallel", "parallel", "parallel"),
            vmem_limit_bytes=64 * 1024 * 1024),
    )(*call_args)
    return y, sums, ssqs


# ----------------------------------------------------------------------------
# Final fused BN (folded to per-channel affine) + ReLU, tiled, lane-dense output.
# ----------------------------------------------------------------------------
def bn_relu_apply(x, scale, shift, *, out_dtype, row_tile=8):
    B, H, W, C = x.shape
    th = _pick_tile(H, row_tile)

    def kernel(x_ref, sc_ref, sh_ref, o_ref):
        o_ref[...] = jnp.maximum(
            x_ref[...].astype(jnp.float32) * sc_ref[...] + sh_ref[...], 0.0
        ).astype(o_ref.dtype)

    return pl.pallas_call(
        kernel,
        out_shape=jax.ShapeDtypeStruct((B, H, W, C), out_dtype),
        grid=(B, H // th),
        in_specs=[pl.BlockSpec((1, th, W, C), lambda b, r: (b, r, 0, 0)),
                  pl.BlockSpec((1, 1, 1, C), lambda b, r: (0, 0, 0, 0)),
                  pl.BlockSpec((1, 1, 1, C), lambda b, r: (0, 0, 0, 0))],
        out_specs=pl.BlockSpec((1, th, W, C), lambda b, r: (b, r, 0, 0)),
        compiler_params=pltpu.CompilerParams(
            dimension_semantics=("parallel", "parallel")),
    )(x, scale.reshape(1, 1, 1, C), shift.reshape(1, 1, 1, C))


def _bn_scale_shift(sums, ssqs, count, gamma, beta, eps):
    """Tiny O(C) finalization of the fused partial statistics (training-mode BN)."""
    s = jnp.sum(sums, axis=(0, 1, 2))
    ss = jnp.sum(ssqs, axis=(0, 1, 2))
    mean = s / count
    var = ss / count - mean * mean          # biased batch variance
    scale = gamma * jax.lax.rsqrt(var + eps)
    shift = beta - mean * scale
    return scale, shift


# ----------------------------------------------------------------------------
# UpBlockForUNetWithResNet50 forward (NCHW in / NCHW out to match PyTorch)
# ----------------------------------------------------------------------------
def up_block_forward(up_x_nchw, down_x_nchw, params, *, compute_dtype=jnp.float32,
                     eps=1e-5, row_tile=8, cout_tile=128):
    cd = compute_dtype
    # NOTE: in a full UNet decoder keep everything NHWC and hoist these boundary
    # transposes (and the weight re-layouts in the wrappers) to parameter-prep time.
    up_x = jnp.transpose(up_x_nchw, (0, 2, 3, 1)).astype(cd)
    down = jnp.transpose(down_x_nchw, (0, 2, 3, 1)).astype(cd)

    # 1) ConvTranspose2d(k=2, s=2), written directly interleaved in NHWC
    y_up = upsample_convtranspose2x2(up_x, params["up_w"], params["up_b"],
                                     out_dtype=cd, cout_tile=cout_tile)
    B, H2, W2, _ = y_up.shape
    count = B * H2 * W2

    # 2) ConvBlock1 over the virtual concat([y_up, down]) (no concat materialized),
    #    BN1 partial statistics fused into the conv.
    y1, s1, q1 = conv3x3_bias_bnstats(
        [y_up, down], params["conv1_w"], params["conv1_b"],
        out_dtype=cd, row_tile=row_tile, cout_tile=cout_tile)
    scale1, shift1 = _bn_scale_shift(s1, q1, count, params["bn1_g"], params["bn1_b"], eps)

    # 3) ConvBlock2: BN1+ReLU applied as a fused prologue on conv2's input tiles
    #    (saves one full HBM write+read of the activation); BN2 stats fused again.
    y2, s2, q2 = conv3x3_bias_bnstats(
        [y1], params["conv2_w"], params["conv2_b"],
        prologue_scale=scale1, prologue_shift=shift1,
        out_dtype=cd, row_tile=row_tile, cout_tile=cout_tile)
    scale2, shift2 = _bn_scale_shift(s2, q2, count, params["bn2_g"], params["bn2_b"], eps)

    # 4) final fused BN2 + ReLU
    out = bn_relu_apply(y2, scale2, shift2, out_dtype=jnp.float32, row_tile=row_tile)
    return jnp.transpose(out, (0, 3, 1, 2))


# ----------------------------------------------------------------------------
# Pure-JAX reference (independent path via lax.conv_general_dilated)
# ----------------------------------------------------------------------------
def reference_forward(up_x, down_x, params, eps=1e-5):
    up_w, up_b = params["up_w"], params["up_b"]
    bsz, ci, h, w = up_x.shape
    co = up_w.shape[1]
    y = jnp.einsum("bihw,ioac->bohwac", up_x, up_w)        # (B,Co,H,W,2,2)
    y = y.transpose(0, 1, 2, 4, 3, 5).reshape(bsz, co, 2 * h, 2 * w)
    y = y + up_b[None, :, None, None]
    x = jnp.concatenate([y, down_x], axis=1)
    for i in (1, 2):
        cw, cb = params[f"conv{i}_w"], params[f"conv{i}_b"]
        g, be = params[f"bn{i}_g"], params[f"bn{i}_b"]
        x = jax.lax.conv_general_dilated(
            x, cw, (1, 1), ((1, 1), (1, 1)),
            dimension_numbers=("NCHW", "OIHW", "NCHW"),
        ) + cb[None, :, None, None]
        mean = x.mean(axis=(0, 2, 3), keepdims=True)
        var = x.var(axis=(0, 2, 3), keepdims=True)
        x = (x - mean) / jnp.sqrt(var + eps) * g[None, :, None, None] \
            + be[None, :, None, None]
        x = jnp.maximum(x, 0.0)
    return x


# ----------------------------------------------------------------------------
# Main
# ----------------------------------------------------------------------------
if __name__ == "__main__":
    # small shapes consistent with the module (defaults: up_conv_* = in/out)
    B = 2
    in_channels = 8        # ConvBlock1 input channels (= concat channels)
    out_channels = 4       # upsample output + both ConvBlock outputs
    H = W = 8              # up_x spatial; down_x / output spatial is 2H = 16

    key = jax.random.PRNGKey(0)
    ks = jax.random.split(key, 12)

    params = {
        # ConvTranspose2d(in_channels, out_channels, k=2, s=2): weight (Ci, Co, 2, 2)
        "up_w":   0.1 * jax.random.normal(ks[0], (in_channels, out_channels, 2, 2), jnp.float32),
        "up_b":   0.1 * jax.random.normal(ks[1], (out_channels,), jnp.float32),
        # ConvBlock1: Conv2d(in_channels, out_channels, 3, pad=1), weight (O, I, 3, 3)
        "conv1_w": 0.1 * jax.random.normal(ks[2], (out_channels, in_channels, 3, 3), jnp.float32),
        "conv1_b": 0.1 * jax.random.normal(ks[3], (out_channels,), jnp.float32),
        "bn1_g":  1.0 + 0.1 * jax.random.normal(ks[4], (out_channels,), jnp.float32),
        "bn1_b":  0.1 * jax.random.normal(ks[5], (out_channels,), jnp.float32),
        # ConvBlock2: Conv2d(out_channels, out_channels, 3, pad=1)
        "conv2_w": 0.1 * jax.random.normal(ks[6], (out_channels, out_channels, 3, 3), jnp.float32),
        "conv2_b": 0.1 * jax.random.normal(ks[7], (out_channels,), jnp.float32),
        "bn2_g":  1.0 + 0.1 * jax.random.normal(ks[8], (out_channels,), jnp.float32),
        "bn2_b":  0.1 * jax.random.normal(ks[9], (out_channels,), jnp.float32),
    }

    up_x = jax.random.normal(ks[10], (B, in_channels, H, W), jnp.float32)
    down_x = jax.random.normal(
        ks[11], (B, in_channels - out_channels, 2 * H, 2 * W), jnp.float32
    )

    ref = jax.block_until_ready(reference_forward(up_x, down_x, params))

    # strict check in f32
    out = jax.block_until_ready(
        up_block_forward(up_x, down_x, params, compute_dtype=jnp.float32))
    assert out.shape == (B, out_channels, 2 * H, 2 * W), out.shape
    err = float(jnp.max(jnp.abs(out - ref)))
    assert err < 1e-3, err

    # bf16 production path (bf16 operands on the MXU, f32 accumulation & BN stats)
    out_bf16 = jax.block_until_ready(
        up_block_forward(up_x, down_x, params, compute_dtype=jnp.bfloat16))
    assert out_bf16.shape == out.shape
    assert bool(jnp.all(jnp.isfinite(out_bf16)))
    assert float(jnp.max(jnp.abs(out_bf16 - ref))) < 0.5

    print("KERNEL_OK")
</pallas_src>

<mosaic_0001>
module attributes {stable_mosaic.version = 11 : i64} {
  func.func @kernel(%arg0: i32, %arg1: i32, %arg2: i32, %arg3: memref<1x1x8x8xf32, #tpu.memory_space<vmem>>, %arg4: memref<2x2x8x4xf32, #tpu.memory_space<vmem>>, %arg5: memref<1x4xf32, #tpu.memory_space<vmem>>, %arg6: memref<1x2x16x4xf32, #tpu.memory_space<vmem>>) attributes {dimension_semantics = [#tpu.dimension_semantics<parallel>, #tpu.dimension_semantics<parallel>, #tpu.dimension_semantics<parallel>], iteration_bounds = array<i64: 2, 8, 1>, scalar_prefetch = 0 : i64, scratch_operands = 0 : i64, tpu.core_type = #tpu.core_type<tc>, window_params = [{transform_indices = @transform_0, window_bounds = array<i64: 1, 1, 8, 8>}, {transform_indices = @transform_1, window_bounds = array<i64: 2, 2, 8, 4>}, {transform_indices = @transform_2, window_bounds = array<i64: 1, 4>}, {transform_indices = @transform_3, window_bounds = array<i64: 1, 2, 16, 4>}]} {
    %c0 = arith.constant 0 : index
    %c0_0 = arith.constant 0 : index
    %c0_1 = arith.constant 0 : index
    %c0_2 = arith.constant 0 : index
    %0 = vector.load %arg3[%c0, %c0_0, %c0_1, %c0_2] : memref<1x1x8x8xf32, #tpu.memory_space<vmem>>, vector<1x1x8x8xf32>
    %1 = vector.shape_cast %0 : vector<1x1x8x8xf32> to vector<8x8xf32>
    %c0_3 = arith.constant 0 : index
    %c0_4 = arith.constant 0 : index
    %2 = vector.load %arg5[%c0_3, %c0_4] : memref<1x4xf32, #tpu.memory_space<vmem>>, vector<1x4xf32>
    %c0_5 = arith.constant 0 : index
    %c0_6 = arith.constant 0 : index
    %c0_7 = arith.constant 0 : index
    %c0_8 = arith.constant 0 : index
    %3 = vector.load %arg4[%c0_5, %c0_6, %c0_7, %c0_8] : memref<2x2x8x4xf32, #tpu.memory_space<vmem>>, vector<1x1x8x4xf32>
    %4 = vector.shape_cast %3 : vector<1x1x8x4xf32> to vector<8x4xf32>
    %cst = arith.constant dense<0.000000e+00> : vector<8x4xf32>
    %5 = tpu.matmul %1, %4, %cst {dimension_numbers = #tpu.dot_dimension_numbers<[1], [0], [0], [1], [0, 0, 1, 1], [], []>} : vector<8x8xf32>, vector<8x4xf32>, vector<8x4xf32> -> vector<8x4xf32>
    %c0_9 = arith.constant 0 : index
    %c1 = arith.constant 1 : index
    %c0_10 = arith.constant 0 : index
    %c0_11 = arith.constant 0 : index
    %6 = vector.load %arg4[%c0_9, %c1, %c0_10, %c0_11] : memref<2x2x8x4xf32, #tpu.memory_space<vmem>>, vector<1x1x8x4xf32>
    %7 = vector.shape_cast %6 : vector<1x1x8x4xf32> to vector<8x4xf32>
    %cst_12 = arith.constant dense<0.000000e+00> : vector<8x4xf32>
    %8 = tpu.matmul %1, %7, %cst_12 {dimension_numbers = #tpu.dot_dimension_numbers<[1], [0], [0], [1], [0, 0, 1, 1], [], []>} : vector<8x8xf32>, vector<8x4xf32>, vector<8x4xf32> -> vector<8x4xf32>
    %9 = vector.shape_cast %5 : vector<8x4xf32> to vector<8x1x4xf32>
    %10 = vector.shape_cast %8 : vector<8x4xf32> to vector<8x1x4xf32>
    %11 = tpu.concatenate %9, %10 in 1 : vector<8x1x4xf32>, vector<8x1x4xf32> -> vector<8x2x4xf32>
    %12 = vector.shape_cast %11 : vector<8x2x4xf32> to vector<16x4xf32>
    %13 = vector.broadcast %2 : vector<1x4xf32> to vector<16x4xf32>
    %14 = arith.addf %12, %13 : vector<16x4xf32>
    %c0_13 = arith.constant 0 : index
    %c0_14 = arith.constant 0 : index
    %c0_15 = arith.constant 0 : index
    %c0_16 = arith.constant 0 : index
    %15 = vector.load %arg6[%c0_13, %c0_14, %c0_15, %c0_16] : memref<1x2x16x4xf32, #tpu.memory_space<vmem>>, vector<1x1x16x4xf32>
    %16 = vector.shape_cast %15 : vector<1x1x16x4xf32> to vector<16x4xf32>
    %17 = vector.shape_cast %14 : vector<16x4xf32> to vector<1x1x16x4xf32>
    tpu.vector_store %arg6[%c0_13, %c0_14, %c0_15, %c0_16], %17 {strides = array<i32>} : memref<1x2x16x4xf32, #tpu.memory_space<vmem>>, vector<1x1x16x4xf32>,
    %c1_17 = arith.constant 1 : index
    %c0_18 = arith.constant 0 : index
    %c0_19 = arith.constant 0 : index
    %c0_20 = arith.constant 0 : index
    %18 = vector.load %arg4[%c1_17, %c0_18, %c0_19, %c0_20] : memref<2x2x8x4xf32, #tpu.memory_space<vmem>>, vector<1x1x8x4xf32>
    %19 = vector.shape_cast %18 : vector<1x1x8x4xf32> to vector<8x4xf32>
    %cst_21 = arith.constant dense<0.000000e+00> : vector<8x4xf32>
    %20 = tpu.matmul %1, %19, %cst_21 {dimension_numbers = #tpu.dot_dimension_numbers<[1], [0], [0], [1], [0, 0, 1, 1], [], []>} : vector<8x8xf32>, vector<8x4xf32>, vector<8x4xf32> -> vector<8x4xf32>
    %c1_22 = arith.constant 1 : index
    %c1_23 = arith.constant 1 : index
    %c0_24 = arith.constant 0 : index
    %c0_25 = arith.constant 0 : index
    %21 = vector.load %arg4[%c1_22, %c1_23, %c0_24, %c0_25] : memref<2x2x8x4xf32, #tpu.memory_space<vmem>>, vector<1x1x8x4xf32>
    %22 = vector.shape_cast %21 : vector<1x1x8x4xf32> to vector<8x4xf32>
    %cst_26 = arith.constant dense<0.000000e+00> : vector<8x4xf32>
    %23 = tpu.matmul %1, %22, %cst_26 {dimension_numbers = #tpu.dot_dimension_numbers<[1], [0], [0], [1], [0, 0, 1, 1], [], []>} : vector<8x8xf32>, vector<8x4xf32>, vector<8x4xf32> -> vector<8x4xf32>
    %24 = vector.shape_cast %20 : vector<8x4xf32> to vector<8x1x4xf32>
    %25 = vector.shape_cast %23 : vector<8x4xf32> to vector<8x1x4xf32>
    %26 = tpu.concatenate %24, %25 in 1 : vector<8x1x4xf32>, vector<8x1x4xf32> -> vector<8x2x4xf32>
    %27 = vector.shape_cast %26 : vector<8x2x4xf32> to vector<16x4xf32>
    %28 = vector.broadcast %2 : vector<1x4xf32> to vector<16x4xf32>
    %29 = arith.addf %27, %28 : vector<16x4xf32>
    %c0_27 = arith.constant 0 : index
    %c1_28 = arith.constant 1 : index
    %c0_29 = arith.constant 0 : index
    %c0_30 = arith.constant 0 : index
    %30 = vector.load %arg6[%c0_27, %c1_28, %c0_29, %c0_30] : memref<1x2x16x4xf32, #tpu.memory_space<vmem>>, vector<1x1x16x4xf32>
    %31 = vector.shape_cast %30 : vector<1x1x16x4xf32> to vector<16x4xf32>
    %32 = vector.shape_cast %29 : vector<16x4xf32> to vector<1x1x16x4xf32>
    tpu.vector_store %arg6[%c0_27, %c1_28, %c0_29, %c0_30], %32 {strides = array<i32>} : memref<1x2x16x4xf32, #tpu.memory_space<vmem>>, vector<1x1x16x4xf32>,
    return
  }
  func.func @transform_0(%arg0: i32, %arg1: i32, %arg2: i32) -> (i32, i32, i32, i32) {
    %c0_i32 = arith.constant 0 : i32
    %c0_i32_0 = arith.constant 0 : i32
    %c0_i32_1 = arith.constant 0 : i32
    return %arg0, %arg1, %c0_i32, %c0_i32_0 : i32, i32, i32, i32
  }
  func.func @transform_1(%arg0: i32, %arg1: i32, %arg2: i32) -> (i32, i32, i32, i32) {
    %c0_i32 = arith.constant 0 : i32
    %c0_i32_0 = arith.constant 0 : i32
    %c0_i32_1 = arith.constant 0 : i32
    %c0_i32_2 = arith.constant 0 : i32
    return %c0_i32, %c0_i32_0, %c0_i32_1, %arg2 : i32, i32, i32, i32
  }
  func.func @transform_2(%arg0: i32, %arg1: i32, %arg2: i32) -> (i32, i32) {
    %c0_i32 = arith.constant 0 : i32
    %c0_i32_0 = arith.constant 0 : i32
    return %c0_i32, %arg2 : i32, i32
  }
  func.func @transform_3(%arg0: i32, %arg1: i32, %arg2: i32) -> (i32, i32, i32, i32) {
    %c0_i32 = arith.constant 0 : i32
    %c0_i32_0 = arith.constant 0 : i32
    return %arg0, %arg1, %c0_i32, %arg2 : i32, i32, i32, i32
  }
}

</mosaic_0001>

<llo_original>
// kernel: tpu_custom_call.1
$region0: #{tpu_custom_call.1}
  #allocation0 [shape = 'u32[]', space=smem, size = 0x4, offset = 0x4, fixed_abs, tag = 'smem constant byte address 0x4 - core index']
  #allocation1 [shape = 'u32[144,128]{1,0:T(1,128)}', space=vmem, size = 0x12000, scoped, tag = 'internal scratch']
  %s0 = inlined_call_operand.hbm [shape: f32[2,8,8,8], index: 0, kind: input, shape index: {}]
  %s1 = inlined_call_operand.hbm [shape: f32[2,2,8,4], index: 1, kind: input, shape index: {}]
  %s2 = inlined_call_operand.hbm [shape: f32[1,4], index: 2, kind: input, shape index: {}]
  %s3 = inlined_call_operand.hbm [shape: f32[2,16,16,4], index: 3, kind: output, shape index: {}]
  %s4 = sld [smem:[#allocation0]]
  $region57: #{tpu_custom_call.1} parent=0
    _
  %s6 = ssub.s32 1, %s4
  %s7 = scalar_select 0, %s6, %s4
  $region1: #{tpu_custom_call.1} parent=0
    #allocation2 [shape = 'u8[8192]{0}', space=vmem, size = 0x2000, scoped, tag = 'input window, operand 0']
    #allocation3 [shape = 's32[2]{0}', space=sflag, size = 0x8, scoped, tag = 'scoped memory for tpu_custom_call.1']
    #allocation4 [shape = 's32[2]{0}', space=sflag, size = 0x8, scoped, tag = 'scoped memory for tpu_custom_call.1']
    #allocation5 [shape = 'u8[16384]{0}', space=vmem, size = 0x4000, scoped, tag = 'input window, operand 1, single buffered']
    #allocation6 [shape = 's32[1]{0}', space=sflag, size = 0x4, scoped, tag = 'scoped memory for tpu_custom_call.1']
    #allocation7 [shape = 'u8[512]{0}', space=vmem, size = 0x400, scoped, tag = 'input window, operand 2, single buffered']
    #allocation8 [shape = 'u8[32768]{0}', space=vmem, size = 0x8000, scoped, tag = 'output window, operand 0']
    %8 = vsyncpa [#allocation3], 0
    %s9 = scalar_lea.sflag [#allocation3], 1
    %10 = vsyncpa %s9, 0
    %11 = vsyncpa [#allocation6], 0
    %12 = vsyncpa [#allocation4], 0
    %s13 = scalar_lea.sflag [#allocation4], 1
    %14 = vsyncpa %s13, 0
    loop: start=0, step=1, limit=18
    $region2: #{tpu_custom_call.1} parent=1 // loop_pre_header
      _
    $region3: #{tpu_custom_call.1} parent=1 // loop_header
      %s16 = sphi 0, %s20
      %p17 = scmp.ge.s32.totalorder %s16, 18
      %s23 = sphi 0, %s42
      %s24 = sphi 0, %s38
      %s25 = sphi 0, %s34
      %s26 = sphi 0, %s23
      %s27 = sphi 0, %s24
      %s28 = sphi 0, %s25
      %s29 = sphi 0, %s26
      %s30 = sphi 0, %s27
      %s31 = sphi 0, %s28
      %s47 = sphi 0, %s49
      %s50 = sphi 0, %s47
      %s51 = sphi 0, %s50
      %s67 = sphi 0, %s51
      %s73 = sphi 0, %s75
      %s76 = sphi 0, %s73
      %s77 = sphi 0, %s76
      %s93 = sphi 0, %s77
      %s99 = sphi 0, %s101
      %s102 = sphi 0, %s99
      %s103 = sphi 0, %s102
      %s119 = sphi 0, %s103
      %s129 = sphi 0, %s131
      %s132 = sphi 0, %s129
      %s133 = sphi 0, %s132
      %s149 = sphi 0, %s133
    $region4: #{tpu_custom_call.1} parent=1 // loop_header_branch
      %19 = sbr.rel (%p17) target = $region8
    $region5: #{tpu_custom_call.1} parent=1 // loop_body
      %s21 = ssub.s32 %s16, 1
      %s22 = ssub.s32 %s16, 2
      %s32 = sadd.s32 1, %s25
      %p33 = scmp.ge.s32.totalorder %s32, 1
      %s34 = scalar_select %p33, 0, %s32
      %s35 = sadd.s32 1, %s24
      %s36 = scalar_select %p33, %s35, %s24
      %p37 = scmp.ge.s32.totalorder %s36, 8
      %s38 = scalar_select %p37, 0, %s36
      %s39 = sadd.s32 1, %s23
      %s40 = scalar_select %p37, %s39, %s23
      %p41 = scmp.ge.s32.totalorder %s40, 2
      %s42 = scalar_select %p41, 0, %s40
      %s43 = ssub.s32 %s23, %s42
      %s44 = ssub.s32 %s24, %s38
      %s45 = sor.u32 %s43, %s44
      %p46 = scmp.eq.s32.totalorder %s45, 0
      %s48 = sadd.s32 %s47, 1
      %s49 = scalar_select %p46, %s47, %s48
      %p52 = pneg %p46
      %p53 = scmp.eq.s32.totalorder %s16, 15
      %p54 = por %p52, %p53
      %p55 = scmp.ne.s32.totalorder %s47, %s50
      %p56 = scmp.eq.s32.totalorder %s16, 0
      %p57 = por %p55, %p56
      %p58 = scmp.ne.s32.totalorder %s47, %s50
      %p59 = scmp.eq.s32.totalorder %s21, 15
      %p60 = por %p58, %p59
      %p61 = scmp.ne.s32.totalorder %s50, %s51
      %p62 = scmp.eq.s32.totalorder %s21, 0
      %p63 = por %p61, %p62
      %p64 = scmp.ne.s32.totalorder %s50, %s51
      %p65 = scmp.eq.s32.totalorder %s22, 15
      %p66 = por %p64, %p65
      %p68 = scmp.ne.s32.totalorder %s51, %s67
      %p69 = scmp.eq.s32.totalorder %s22, 0
      %p70 = por %p68, %p69
      %s71 = ssub.s32 %s25, %s34
      %p72 = scmp.eq.s32.totalorder %s71, 0
      %s74 = sadd.s32 %s73, 1
      %s75 = scalar_select %p72, %s73, %s74
      %p78 = pneg %p72
      %p79 = scmp.eq.s32.totalorder %s16, 15
      %p80 = por %p78, %p79
      %p81 = scmp.ne.s32.totalorder %s73, %s76
      %p82 = scmp.eq.s32.totalorder %s16, 0
      %p83 = por %p81, %p82
      %p84 = scmp.ne.s32.totalorder %s73, %s76
      %p85 = scmp.eq.s32.totalorder %s21, 15
      %p86 = por %p84, %p85
      %p87 = scmp.ne.s32.totalorder %s76, %s77
      %p88 = scmp.eq.s32.totalorder %s21, 0
      %p89 = por %p87, %p88
      %p90 = scmp.ne.s32.totalorder %s76, %s77
      %p91 = scmp.eq.s32.totalorder %s22, 15
      %p92 = por %p90, %p91
      %p94 = scmp.ne.s32.totalorder %s77, %s93
      %p95 = scmp.eq.s32.totalorder %s22, 0
      %p96 = por %p94, %p95
      %s97 = ssub.s32 %s25, %s34
      %p98 = scmp.eq.s32.totalorder %s97, 0
      %s100 = sadd.s32 %s99, 1
      %s101 = scalar_select %p98, %s99, %s100
      %p104 = pneg %p98
      %p105 = scmp.eq.s32.totalorder %s16, 15
      %p106 = por %p104, %p105
      %p107 = scmp.ne.s32.totalorder %s99, %s102
      %p108 = scmp.eq.s32.totalorder %s16, 0
      %p109 = por %p107, %p108
      %p110 = scmp.ne.s32.totalorder %s99, %s102
      %p111 = scmp.eq.s32.totalorder %s21, 15
      %p112 = por %p110, %p111
      %p113 = scmp.ne.s32.totalorder %s102, %s103
      %p114 = scmp.eq.s32.totalorder %s21, 0
      %p115 = por %p113, %p114
      %p116 = scmp.ne.s32.totalorder %s102, %s103
      %p117 = scmp.eq.s32.totalorder %s22, 15
      %p118 = por %p116, %p117
      %p120 = scmp.ne.s32.totalorder %s103, %s119
      %p121 = scmp.eq.s32.totalorder %s22, 0
      %p122 = por %p120, %p121
      %s123 = ssub.s32 %s23, %s42
      %s124 = ssub.s32 %s24, %s38
      %s125 = sor.u32 %s123, %s124
      %s126 = ssub.s32 %s25, %s34
      %s127 = sor.u32 %s125, %s126
      %p128 = scmp.eq.s32.totalorder %s127, 0
      %s130 = sadd.s32 %s129, 1
      %s131 = scalar_select %p128, %s129, %s130
      %p134 = pneg %p128
      %p135 = scmp.eq.s32.totalorder %s16, 15
      %p136 = por %p134, %p135
      %p137 = scmp.ne.s32.totalorder %s129, %s132
      %p138 = scmp.eq.s32.totalorder %s16, 0
      %p139 = por %p137, %p138
      %p140 = scmp.ne.s32.totalorder %s129, %s132
      %p141 = scmp.eq.s32.totalorder %s21, 15
      %p142 = por %p140, %p141
      %p143 = scmp.ne.s32.totalorder %s132, %s133
      %p144 = scmp.eq.s32.totalorder %s21, 0
      %p145 = por %p143, %p144
      %p146 = scmp.ne.s32.totalorder %s132, %s133
      %p147 = scmp.eq.s32.totalorder %s22, 15
      %p148 = por %p146, %p147
      %p150 = scmp.ne.s32.totalorder %s133, %s149
      %p151 = scmp.eq.s32.totalorder %s22, 0
      %p152 = por %p150, %p151
      %p153 = scmp.le.s32.totalorder 1, %s16
      %p154 = scmp.lt.s32.totalorder %s16, 17
      %p155 = pnand %p153, %p154
      %p156 = pneg %p155
      // Predicated region
      $region9: #{tpu_custom_call.1} parent=5 // pred_check
        _
      $region10: #{tpu_custom_call.1} parent=5 // pred_check_branch
        %158 = sbr.rel (%p155) target = $region12
      $region11: #{tpu_custom_call.1} parent=5 // pred_region
        %s159 = ssub.s32 %s16, 1
        // Predicated region
        $region13: #{tpu_custom_call.1} parent=11 // pred_check
          %p160 = pneg %p89
        $region14: #{tpu_custom_call.1} parent=11 // pred_check_branch
          %162 = sbr.rel (%p160) target = $region16
        $region15: #{tpu_custom_call.1} parent=11 // pred_region
          %s164 = ssub.s32 512, 512
          %165 = vsyncadd [#allocation6], %s164
          %s166 = smul.addr %s28, 128
          %s167 = scalar_lea.hbm %s1, %s166
          %s168 = sshll.u32 [#allocation5], 4
          %s169 = int_to_ptr.vmem [resolvable:$true] %s168
          %174 = dma.hbm_to_vmem [thread:$0]  %s167, 512, %s169, [#allocation6], 128, 128, 8
        $region16: #{tpu_custom_call.1} parent=11 // pred_fallthru
          _
        // Predicated region
        $region17: #{tpu_custom_call.1} parent=11 // pred_check
          %p175 = pneg %p115
        $region18: #{tpu_custom_call.1} parent=11 // pred_check_branch
          %177 = sbr.rel (%p175) target = $region20
        $region19: #{tpu_custom_call.1} parent=11 // pred_region
          %s179 = ssub.s32 16, 16
          %180 = vsyncadd [#allocation6], %s179
          %s181 = smul.addr %s28, 16
          %s182 = scalar_lea.hbm %s2, %s181
          %s184 = sshll.u32 [#allocation7], 4
          %s185 = int_to_ptr.vmem [resolvable:$true] %s184
          %187 = dma.hbm_to_vmem [thread:$0]  %s182, 16, %s185, [#allocation6]
        $region20: #{tpu_custom_call.1} parent=11 // pred_fallthru
          _
      $region12: #{tpu_custom_call.1} parent=5 // pred_fallthru
        _
      %p188 = scmp.lt.s32.totalorder %s16, 16
      // Predicated region
      $region21: #{tpu_custom_call.1} parent=5 // pred_check
        %p189 = pneg %p188
      $region22: #{tpu_custom_call.1} parent=5 // pred_check_branch
        %191 = sbr.rel (%p189) target = $region24
      $region23: #{tpu_custom_call.1} parent=5 // pred_region
        // Predicated region
        $region25: #{tpu_custom_call.1} parent=23 // pred_check
          %p192 = pneg %p57
        $region26: #{tpu_custom_call.1} parent=23 // pred_check_branch
          %194 = sbr.rel (%p192) target = $region28
        $region27: #{tpu_custom_call.1} parent=23 // pred_region
          %s195 = sand.u32 %s47, 1
          %s196 = scalar_lea.sflag [#allocation3], %s195
          %s197 = sand.u32 %s47, 1
          %s198 = smul.addr %s197, 8
          %s199 = scalar_lea.vmem [#allocation2], %s198
          %s201 = ssub.s32 128, 128
          %202 = vsyncadd %s196, %s201
          %s203 = smul.addr %s23, 8
          %s204 = sadd.s32 %s24, %s203
          %s205 = smul.addr %s204, 128
          %s206 = scalar_lea.hbm %s0, %s205
          %s208 = sshll.u32 %s199, 4
          %s209 = int_to_ptr.vmem [resolvable:$true] %s208
          %211 = dma.hbm_to_vmem [thread:$0]  %s206, 128, %s209, %s196
        $region28: #{tpu_custom_call.1} parent=23 // pred_fallthru
          _
      $region24: #{tpu_custom_call.1} parent=5 // pred_fallthru
        _
      %p212 = scmp.le.s32.totalorder 1, %s16
      %p213 = scmp.lt.s32.totalorder %s16, 17
      %p214 = pnand %p212, %p213
      %p215 = pneg %p214
      // Predicated region
      $region29: #{tpu_custom_call.1} parent=5 // pred_check
        _
      $region30: #{tpu_custom_call.1} parent=5 // pred_check_branch
        %217 = sbr.rel (%p214) target = $region32
      $region31: #{tpu_custom_call.1} parent=5 // pred_region
        %s218 = ssub.s32 %s16, 1
        %s219 = sand.u32 %s50, 1
        %s220 = scalar_lea.sflag [#allocation3], %s219
        %s221 = sand.u32 %s50, 1
        %s222 = smul.addr %s221, 8
        %s223 = scalar_lea.vmem [#allocation2], %s222
        // Predicated region
        $region33: #{tpu_custom_call.1} parent=31 // pred_check
          %p224 = pneg %p63
        $region34: #{tpu_custom_call.1} parent=31 // pred_check_branch
          %226 = sbr.rel (%p224) target = $region36
        $region35: #{tpu_custom_call.1} parent=31 // pred_region
          %227 = dma.done %s220, 128
        $region36: #{tpu_custom_call.1} parent=31 // pred_fallthru
          _
        // Predicated region
        $region37: #{tpu_custom_call.1} parent=31 // pred_check
          %p228 = pneg %p89
        $region38: #{tpu_custom_call.1} parent=31 // pred_check_branch
          %230 = sbr.rel (%p228) target = $region40
        $region39: #{tpu_custom_call.1} parent=31 // pred_region
          %231 = dma.done [#allocation6], 512
        $region40: #{tpu_custom_call.1} parent=31 // pred_fallthru
          _
        // Predicated region
        $region41: #{tpu_custom_call.1} parent=31 // pred_check
          %p232 = pneg %p115
        $region42: #{tpu_custom_call.1} parent=31 // pred_check_branch
          %234 = sbr.rel (%p232) target = $region44
        $region43: #{tpu_custom_call.1} parent=31 // pred_region
          %235 = dma.done [#allocation6], 16
        $region44: #{tpu_custom_call.1} parent=31 // pred_fallthru
          _
        %s236 = sand.u32 %s50, 1
        %s237 = scalar_lea.sflag [#allocation3], %s236
        %s238 = sand.u32 %s50, 1
        %s239 = smul.addr %s238, 8
        %s240 = scalar_lea.vmem [#allocation2], %s239
        %p241 = pneg %p63
        %p242 = pneg %p60
        %p243 = pneg %p89
        %p244 = pneg %p86
        %p245 = pneg %p115
        %p246 = pneg %p112
        %p247 = pneg %p145
        %p248 = pneg %p142
        %s249 = sand.u32 %s132, 1
        %s250 = scalar_lea.sflag [#allocation4], %s249
        %s251 = sand.u32 %s132, 1
        %s252 = smul.addr %s251, 32
        %s253 = scalar_lea.vmem [#allocation8], %s252
        %s254 = smul.u32 2, %s27
        %v255 = vld [vmem:[%s223] sm:$0xff]
        %v256 = vld [vmem:[#allocation7] sm:$0x1]
        %v257 = vld [vmem:[#allocation5] sm:$0xff]
        %vm258 = vcmask 64512
        %v260 = vsel %vm258, %v255, 0
        %262 = vmatprep.subr.mxu0 0.0
        %263 = vmatpush1.msra.mxu0 %v257
        %264 = vmatprep.subr.mxu0 0.0
        %265 = vmatpush1.msra.mxu0 0.0
        %266 = vmatprep.subr.mxu0 0.0
        %267 = vmatpush1.msra.mxu0 0.0
        %268 = vmatprep.subr.mxu0 0.0
        %269 = vmatpush1.msra.mxu0 0.0
        %270 = vmatprep.subr.mxu0 0.0
        %271 = vmatpush1.msra.mxu0 0.0
        %272 = vmatprep.subr.mxu0 0.0
        %273 = vmatpush1.msra.mxu0 0.0
        %274 = vmatprep.subr.mxu0 0.0
        %275 = vmatpush1.msra.mxu0 0.0
        %276 = vmatprep.subr.mxu0 0.0
        %277 = vmatpush1.msra.mxu0 0.0
        %278 = vmatprep.subr.mxu0 0.0
        %279 = vmatpush1.msra.mxu0 0.0
        %280 = vmatprep.subr.mxu0 0.0
        %281 = vmatpush1.msra.mxu0 0.0
        %282 = vmatprep.subr.mxu0 0.0
        %283 = vmatpush1.msra.mxu0 0.0
        %284 = vmatprep.subr.mxu0 0.0
        %285 = vmatpush1.msra.mxu0 0.0
        %286 = vmatprep.subr.mxu0 0.0
        %287 = vmatpush1.msra.mxu0 0.0
        %288 = vmatprep.subr.mxu0 0.0
        %289 = vmatpush1.msra.mxu0 0.0
        %290 = vmatprep.subr.mxu0 0.0
        %291 = vmatpush1.msra.mxu0 0.0
        %292 = vmatprep.subr.mxu0 0.0
        %293 = vmatpush1.msra.mxu0 0.0
        %294 = vmatprep.subr.mxu0 0.0
        %295 = vmatpush1.msra.mxu0 0.0
        %296 = vmatprep.subr.mxu0 0.0
        %297 = vmatpush1.msra.mxu0 0.0
        %298 = vmatprep.subr.mxu0 0.0
        %299 = vmatpush1.msra.mxu0 0.0
        %300 = vmatprep.subr.mxu0 0.0
        %301 = vmatpush1.msra.mxu0 0.0
        %302 = vmatprep.subr.mxu0 0.0
        %303 = vmatpush1.msra.mxu0 0.0
        %304 = vmatprep.subr.mxu0 0.0
        %305 = vmatpush1.msra.mxu0 0.0
        %306 = vmatprep.subr.mxu0 0.0
        %307 = vmatpush1.msra.mxu0 0.0
        %308 = vmatprep.subr.mxu0 0.0
        %309 = vmatpush1.msra.mxu0 0.0
        %310 = vmatprep.subr.mxu0 0.0
        %311 = vmatpush1.msra.mxu0 0.0
        %312 = vmatprep.subr.mxu0 0.0
        %313 = vmatpush1.msra.mxu0 0.0
        %314 = vmatprep.subr.mxu0 0.0
        %315 = vmatpush1.msra.mxu0 0.0
        %316 = vmatprep.subr.mxu0 0.0
        %317 = vmatpush1.msra.mxu0 0.0
        %318 = vmatprep.subr.mxu0 0.0
        %319 = vmatpush1.msra.mxu0 0.0
        %320 = vmatprep.subr.mxu0 0.0
        %321 = vmatpush1.msra.mxu0 0.0
        %322 = vmatprep.subr.mxu0 0.0
        %323 = vmatpush1.msra.mxu0 0.0
        %324 = vmatprep.subr.mxu0 0.0
        %325 = vmatpush1.msra.mxu0 0.0
        %326 = vmatprep.mubr.f32.mxu0 0.0
        %327 = vmatmul.mubr.f32.gmra.mrb[0].mxu0 %v260
        %v328 = vpop.f32.mrb[0].mxu0
        %v329 = vadd.f32 0.0, %v328
        %v330 = vpop.f32.mrb[0].mxu0
        %331 = vdwg.mxu0
        %s332 = scalar_lea.vmem [#allocation5], 8
        %v333 = vld [vmem:[%s332] sm:$0xff]
        %334 = vmatprep.subr.mxu0 0.0
        %335 = vmatpush1.msra.mxu0 %v333
        %336 = vmatprep.subr.mxu0 0.0
        %337 = vmatpush1.msra.mxu0 0.0
        %338 = vmatprep.subr.mxu0 0.0
        %339 = vmatpush1.msra.mxu0 0.0
        %340 = vmatprep.subr.mxu0 0.0
        %341 = vmatpush1.msra.mxu0 0.0
        %342 = vmatprep.subr.mxu0 0.0
        %343 = vmatpush1.msra.mxu0 0.0
        %344 = vmatprep.subr.mxu0 0.0
        %345 = vmatpush1.msra.mxu0 0.0
        %346 = vmatprep.subr.mxu0 0.0
        %347 = vmatpush1.msra.mxu0 0.0
        %348 = vmatprep.subr.mxu0 0.0
        %349 = vmatpush1.msra.mxu0 0.0
        %350 = vmatprep.subr.mxu0 0.0
        %351 = vmatpush1.msra.mxu0 0.0
        %352 = vmatprep.subr.mxu0 0.0
        %353 = vmatpush1.msra.mxu0 0.0
        %354 = vmatprep.subr.mxu0 0.0
        %355 = vmatpush1.msra.mxu0 0.0
        %356 = vmatprep.subr.mxu0 0.0
        %357 = vmatpush1.msra.mxu0 0.0
        %358 = vmatprep.subr.mxu0 0.0
        %359 = vmatpush1.msra.mxu0 0.0
        %360 = vmatprep.subr.mxu0 0.0
        %361 = vmatpush1.msra.mxu0 0.0
        %362 = vmatprep.subr.mxu0 0.0
        %363 = vmatpush1.msra.mxu0 0.0
        %364 = vmatprep.subr.mxu0 0.0
        %365 = vmatpush1.msra.mxu0 0.0
        %366 = vmatprep.subr.mxu0 0.0
        %367 = vmatpush1.msra.mxu0 0.0
        %368 = vmatprep.subr.mxu0 0.0
        %369 = vmatpush1.msra.mxu0 0.0
        %370 = vmatprep.subr.mxu0 0.0
        %371 = vmatpush1.msra.mxu0 0.0
        %372 = vmatprep.subr.mxu0 0.0
        %373 = vmatpush1.msra.mxu0 0.0
        %374 = vmatprep.subr.mxu0 0.0
        %375 = vmatpush1.msra.mxu0 0.0
        %376 = vmatprep.subr.mxu0 0.0
        %377 = vmatpush1.msra.mxu0 0.0
        %378 = vmatprep.subr.mxu0 0.0
        %379 = vmatpush1.msra.mxu0 0.0
        %380 = vmatprep.subr.mxu0 0.0
        %381 = vmatpush1.msra.mxu0 0.0
        %382 = vmatprep.subr.mxu0 0.0
        %383 = vmatpush1.msra.mxu0 0.0
        %384 = vmatprep.subr.mxu0 0.0
        %385 = vmatpush1.msra.mxu0 0.0
        %386 = vmatprep.subr.mxu0 0.0
        %387 = vmatpush1.msra.mxu0 0.0
        %388 = vmatprep.subr.mxu0 0.0
        %389 = vmatpush1.msra.mxu0 0.0
        %390 = vmatprep.subr.mxu0 0.0
        %391 = vmatpush1.msra.mxu0 0.0
        %392 = vmatprep.subr.mxu0 0.0
        %393 = vmatpush1.msra.mxu0 0.0
        %394 = vmatprep.subr.mxu0 0.0
        %395 = vmatpush1.msra.mxu0 0.0
        %396 = vmatprep.subr.mxu0 0.0
        %397 = vmatpush1.msra.mxu0 0.0
        %398 = vmatprep.mubr.f32.mxu0 0.0
        %399 = vmatmul.mubr.f32.gmra.mrb[0].mxu0 %v260
        %v400 = vpop.f32.mrb[0].mxu0
        %v401 = vadd.f32 0.0, %v400
        %v402 = vpop.f32.mrb[0].mxu0
        %403 = vdwg.mxu0
        %v405 = vcombine.high %v329, %v329
        %v407 = vunpack.c.l.s4 1966171168
        %v408 = vunpack.c.0.s8 %v407
        %v409 = vlaneseq
        %v410 = vshrl.u32 %v409, 7
        %v411 = vsub.s32 %v408, %v410
        %v412 = vrot.slane %v329, %v411
        %v414 = vunpack.c.l.s4 1966171168
        %v415 = vunpack.c.0.s8 %v414
        %v416 = vlaneseq
        %v417 = vshrl.u32 %v416, 7
        %v418 = vsub.s32 %v415, %v417
        %v419 = vrot.slane %v405, %v418
        %v420 = vcombine.high %v412, %v412
        %v421 = vcombine.high %v419, %v419
        %v423 = vunpack.c.l.s4 1966171168
        %v424 = vunpack.c.0.s8 %v423
        %v425 = vlaneseq
        %v426 = vshrl.u32 %v425, 7
        %v427 = vsub.s32 %v424, %v426
        %v428 = vrot.slane %v412, %v427
        %v430 = vunpack.c.l.s4 1966171168
        %v431 = vunpack.c.0.s8 %v430
        %v432 = vlaneseq
        %v433 = vshrl.u32 %v432, 7
        %v434 = vsub.s32 %v431, %v433
        %v435 = vrot.slane %v419, %v434
        %v437 = vunpack.c.l.s4 1966171168
        %v438 = vunpack.c.0.s8 %v437
        %v439 = vlaneseq
        %v440 = vshrl.u32 %v439, 7
        %v441 = vsub.s32 %v438, %v440
        %v442 = vrot.slane %v420, %v441
        %v444 = vunpack.c.l.s4 1966171168
        %v445 = vunpack.c.0.s8 %v444
        %v446 = vlaneseq
        %v447 = vshrl.u32 %v446, 7
        %v448 = vsub.s32 %v445, %v447
        %v449 = vrot.slane %v421, %v448
        %v450 = vcombine.high %v428, %v428
        %v451 = vcombine.high %v435, %v435
        %v452 = vcombine.high %v442, %v442
        %v453 = vcombine.high %v449, %v449
        %v463 = vcombine.high %v401, %v401
        %v465 = vunpack.c.l.s4 1966171168
        %v466 = vunpack.c.0.s8 %v465
        %v467 = vlaneseq
        %v468 = vshrl.u32 %v467, 7
        %v469 = vsub.s32 %v466, %v468
        %v470 = vrot.slane %v401, %v469
        %v472 = vunpack.c.l.s4 1966171168
        %v473 = vunpack.c.0.s8 %v472
        %v474 = vlaneseq
        %v475 = vshrl.u32 %v474, 7
        %v476 = vsub.s32 %v473, %v475
        %v477 = vrot.slane %v463, %v476
        %v478 = vcombine.high %v470, %v470
        %v479 = vcombine.high %v477, %v477
        %v481 = vunpack.c.l.s4 1966171168
        %v482 = vunpack.c.0.s8 %v481
        %v483 = vlaneseq
        %v484 = vshrl.u32 %v483, 7
        %v485 = vsub.s32 %v482, %v484
        %v486 = vrot.slane %v470, %v485
        %v488 = vunpack.c.l.s4 1966171168
        %v489 = vunpack.c.0.s8 %v488
        %v490 = vlaneseq
        %v491 = vshrl.u32 %v490, 7
        %v492 = vsub.s32 %v489, %v491
        %v493 = vrot.slane %v477, %v492
        %v495 = vunpack.c.l.s4 1966171168
        %v496 = vunpack.c.0.s8 %v495
        %v497 = vlaneseq
        %v498 = vshrl.u32 %v497, 7
        %v499 = vsub.s32 %v496, %v498
        %v500 = vrot.slane %v478, %v499
        %v502 = vunpack.c.l.s4 1966171168
        %v503 = vunpack.c.0.s8 %v502
        %v504 = vlaneseq
        %v505 = vshrl.u32 %v504, 7
        %v506 = vsub.s32 %v503, %v505
        %v507 = vrot.slane %v479, %v506
        %v508 = vcombine.high %v486, %v486
        %v509 = vcombine.high %v493, %v493
        %v510 = vcombine.high %v500, %v500
        %v511 = vcombine.high %v507, %v507
        %v512 = vlaneseq
        %v513 = vshrl.u32 %v512, 7
        %v514 = vsub.s32 0, %v513
        %v515 = vrot.slane %v486, %v514
        %v516 = vlaneseq
        %v517 = vshrl.u32 %v516, 7
        %v518 = vsub.s32 0, %v517
        %v519 = vrot.slane %v500, %v518
        %v520 = vlaneseq
        %v521 = vshrl.u32 %v520, 7
        %v522 = vsub.s32 0, %v521
        %v523 = vrot.slane %v508, %v522
        %v524 = vlaneseq
        %v525 = vshrl.u32 %v524, 7
        %v526 = vsub.s32 0, %v525
        %v527 = vrot.slane %v510, %v526
        %v528 = vlaneseq
        %v529 = vshrl.u32 %v528, 7
        %v530 = vsub.s32 0, %v529
        %v531 = vrot.slane %v493, %v530
        %v532 = vlaneseq
        %v533 = vshrl.u32 %v532, 7
        %v534 = vsub.s32 0, %v533
        %v535 = vrot.slane %v507, %v534
        %v536 = vlaneseq
        %v537 = vshrl.u32 %v536, 7
        %v538 = vsub.s32 0, %v537
        %v539 = vrot.slane %v509, %v538
        %v540 = vlaneseq
        %v541 = vshrl.u32 %v540, 7
        %v542 = vsub.s32 0, %v541
        %v543 = vrot.slane %v511, %v542
        %vm552 = vcmask 1040384
        %v553 = vsel %vm552, %v428, %v515
        %v554 = vsel %vm552, %v442, %v519
        %v555 = vsel %vm552, %v450, %v523
        %v556 = vsel %vm552, %v452, %v527
        %v557 = vsel %vm552, %v435, %v531
        %v558 = vsel %vm552, %v449, %v535
        %v559 = vsel %vm552, %v451, %v539
        %v560 = vsel %vm552, %v453, %v543
        %v562 = vlaneseq
        %v563 = vshrl.u32 %v562, 7
        %v564 = vsub.s32 0, %v563
        %v565 = vrot.slane %v256, %v564
        %v566 = vcombine.high %v565, %v565
        %v568 = vunpack.c.l.s4 1983009808
        %v569 = vunpack.c.0.s8 %v568
        %v570 = vlaneseq
        %v571 = vshrl.u32 %v570, 7
        %v572 = vsub.s32 %v569, %v571
        %v573 = vrot.slane %v565, %v572
        %v575 = vunpack.c.l.s4 1983009808
        %v576 = vunpack.c.0.s8 %v575
        %v577 = vlaneseq
        %v578 = vshrl.u32 %v577, 7
        %v579 = vsub.s32 %v576, %v578
        %v580 = vrot.slane %v566, %v579
        %v581 = vcombine.high %v573, %v573
        %v582 = vcombine.high %v580, %v580
        %v587 = vadd.f32 %v553, %v573
        %v588 = vadd.f32 %v554, %v581
        %v589 = vadd.f32 %v555, %v580
        %v590 = vadd.f32 %v556, %v582
        %v591 = vadd.f32 %v557, %v573
        %v592 = vadd.f32 %v558, %v581
        %v593 = vadd.f32 %v559, %v580
        %v594 = vadd.f32 %v560, %v582
        %v603 = vcombine.low %v587, %v588
        %v604 = vcombine.low %v589, %v590
        %v606 = vunpack.c.l.s4 1983009808
        %v607 = vunpack.c.0.s8 %v606
        %v608 = vlaneseq
        %v609 = vshrl.u32 %v608, 7
        %v610 = vsub.s32 %v607, %v609
        %v611 = vrot.slane %v603, %v610
        %v613 = vunpack.c.l.s4 1983009808
        %v614 = vunpack.c.0.s8 %v613
        %v615 = vlaneseq
        %v616 = vshrl.u32 %v615, 7
        %v617 = vsub.s32 %v614, %v616
        %v618 = vrot.slane %v604, %v617
        %v619 = vcombine.low %v611, %v618
        %v620 = vcombine.low %v591, %v592
        %v621 = vcombine.low %v593, %v594
        %v623 = vunpack.c.l.s4 1983009808
        %v624 = vunpack.c.0.s8 %v623
        %v625 = vlaneseq
        %v626 = vshrl.u32 %v625, 7
        %v627 = vsub.s32 %v624, %v626
        %v628 = vrot.slane %v620, %v627
        %v630 = vunpack.c.l.s4 1983009808
        %v631 = vunpack.c.0.s8 %v630
        %v632 = vlaneseq
        %v633 = vshrl.u32 %v632, 7
        %v634 = vsub.s32 %v631, %v633
        %v635 = vrot.slane %v621, %v634
        %v636 = vcombine.low %v628, %v635
        %vm639 = vcmask 31744
        %640 = vst.msk [vmem:[%s253] sm:$0xff] %vm639, %v619
        %641 = vst.msk [vmem:[%s253 + $0x8] sm:$0xff] %vm639, %v636
        %s642 = scalar_lea.vmem [#allocation5], 16
        %v643 = vld [vmem:[%s642] sm:$0xff]
        %644 = vmatprep.subr.mxu0 0.0
        %645 = vmatpush1.msra.mxu0 %v643
        %646 = vmatprep.subr.mxu0 0.0
        %647 = vmatpush1.msra.mxu0 0.0
        %648 = vmatprep.subr.mxu0 0.0
        %649 = vmatpush1.msra.mxu0 0.0
        %650 = vmatprep.subr.mxu0 0.0
        %651 = vmatpush1.msra.mxu0 0.0
        %652 = vmatprep.subr.mxu0 0.0
        %653 = vmatpush1.msra.mxu0 0.0
        %654 = vmatprep.subr.mxu0 0.0
        %655 = vmatpush1.msra.mxu0 0.0
        %656 = vmatprep.subr.mxu0 0.0
        %657 = vmatpush1.msra.mxu0 0.0
        %658 = vmatprep.subr.mxu0 0.0
        %659 = vmatpush1.msra.mxu0 0.0
        %660 = vmatprep.subr.mxu0 0.0
        %661 = vmatpush1.msra.mxu0 0.0
        %662 = vmatprep.subr.mxu0 0.0
        %663 = vmatpush1.msra.mxu0 0.0
        %664 = vmatprep.subr.mxu0 0.0
        %665 = vmatpush1.msra.mxu0 0.0
        %666 = vmatprep.subr.mxu0 0.0
        %667 = vmatpush1.msra.mxu0 0.0
        %668 = vmatprep.subr.mxu0 0.0
        %669 = vmatpush1.msra.mxu0 0.0
        %670 = vmatprep.subr.mxu0 0.0
        %671 = vmatpush1.msra.mxu0 0.0
        %672 = vmatprep.subr.mxu0 0.0
        %673 = vmatpush1.msra.mxu0 0.0
        %674 = vmatprep.subr.mxu0 0.0
        %675 = vmatpush1.msra.mxu0 0.0
        %676 = vmatprep.subr.mxu0 0.0
        %677 = vmatpush1.msra.mxu0 0.0
        %678 = vmatprep.subr.mxu0 0.0
        %679 = vmatpush1.msra.mxu0 0.0
        %680 = vmatprep.subr.mxu0 0.0
        %681 = vmatpush1.msra.mxu0 0.0
        %682 = vmatprep.subr.mxu0 0.0
        %683 = vmatpush1.msra.mxu0 0.0
        %684 = vmatprep.subr.mxu0 0.0
        %685 = vmatpush1.msra.mxu0 0.0
        %686 = vmatprep.subr.mxu0 0.0
        %687 = vmatpush1.msra.mxu0 0.0
        %688 = vmatprep.subr.mxu0 0.0
        %689 = vmatpush1.msra.mxu0 0.0
        %690 = vmatprep.subr.mxu0 0.0
        %691 = vmatpush1.msra.mxu0 0.0
        %692 = vmatprep.subr.mxu0 0.0
        %693 = vmatpush1.msra.mxu0 0.0
        %694 = vmatprep.subr.mxu0 0.0
        %695 = vmatpush1.msra.mxu0 0.0
        %696 = vmatprep.subr.mxu0 0.0
        %697 = vmatpush1.msra.mxu0 0.0
        %698 = vmatprep.subr.mxu0 0.0
        %699 = vmatpush1.msra.mxu0 0.0
        %700 = vmatprep.subr.mxu0 0.0
        %701 = vmatpush1.msra.mxu0 0.0
        %702 = vmatprep.subr.mxu0 0.0
        %703 = vmatpush1.msra.mxu0 0.0
        %704 = vmatprep.subr.mxu0 0.0
        %705 = vmatpush1.msra.mxu0 0.0
        %706 = vmatprep.subr.mxu0 0.0
        %707 = vmatpush1.msra.mxu0 0.0
        %708 = vmatprep.mubr.f32.mxu0 0.0
        %709 = vmatmul.mubr.f32.gmra.mrb[0].mxu0 %v260
        %v710 = vpop.f32.mrb[0].mxu0
        %v711 = vadd.f32 0.0, %v710
        %v712 = vpop.f32.mrb[0].mxu0
        %713 = vdwg.mxu0
        %s714 = scalar_lea.vmem [#allocation5], 24
        %v715 = vld [vmem:[%s714] sm:$0xff]
        %716 = vmatprep.subr.mxu0 0.0
        %717 = vmatpush1.msra.mxu0 %v715
        %718 = vmatprep.subr.mxu0 0.0
        %719 = vmatpush1.msra.mxu0 0.0
        %720 = vmatprep.subr.mxu0 0.0
        %721 = vmatpush1.msra.mxu0 0.0
        %722 = vmatprep.subr.mxu0 0.0
        %723 = vmatpush1.msra.mxu0 0.0
        %724 = vmatprep.subr.mxu0 0.0
        %725 = vmatpush1.msra.mxu0 0.0
        %726 = vmatprep.subr.mxu0 0.0
        %727 = vmatpush1.msra.mxu0 0.0
        %728 = vmatprep.subr.mxu0 0.0
        %729 = vmatpush1.msra.mxu0 0.0
        %730 = vmatprep.subr.mxu0 0.0
        %731 = vmatpush1.msra.mxu0 0.0
        %732 = vmatprep.subr.mxu0 0.0
        %733 = vmatpush1.msra.mxu0 0.0
        %734 = vmatprep.subr.mxu0 0.0
        %735 = vmatpush1.msra.mxu0 0.0
        %736 = vmatprep.subr.mxu0 0.0
        %737 = vmatpush1.msra.mxu0 0.0
        %738 = vmatprep.subr.mxu0 0.0
        %739 = vmatpush1.msra.mxu0 0.0
        %740 = vmatprep.subr.mxu0 0.0
        %741 = vmatpush1.msra.mxu0 0.0
        %742 = vmatprep.subr.mxu0 0.0
        %743 = vmatpush1.msra.mxu0 0.0
        %744 = vmatprep.subr.mxu0 0.0
        %745 = vmatpush1.msra.mxu0 0.0
        %746 = vmatprep.subr.mxu0 0.0
        %747 = vmatpush1.msra.mxu0 0.0
        %748 = vmatprep.subr.mxu0 0.0
        %749 = vmatpush1.msra.mxu0 0.0
        %750 = vmatprep.subr.mxu0 0.0
        %751 = vmatpush1.msra.mxu0 0.0
        %752 = vmatprep.subr.mxu0 0.0
        %753 = vmatpush1.msra.mxu0 0.0
        %754 = vmatprep.subr.mxu0 0.0
        %755 = vmatpush1.msra.mxu0 0.0
        %756 = vmatprep.subr.mxu0 0.0
        %757 = vmatpush1.msra.mxu0 0.0
        %758 = vmatprep.subr.mxu0 0.0
        %759 = vmatpush1.msra.mxu0 0.0
        %760 = vmatprep.subr.mxu0 0.0
        %761 = vmatpush1.msra.mxu0 0.0
        %762 = vmatprep.subr.mxu0 0.0
        %763 = vmatpush1.msra.mxu0 0.0
        %764 = vmatprep.subr.mxu0 0.0
        %765 = vmatpush1.msra.mxu0 0.0
        %766 = vmatprep.subr.mxu0 0.0
        %767 = vmatpush1.msra.mxu0 0.0
        %768 = vmatprep.subr.mxu0 0.0
        %769 = vmatpush1.msra.mxu0 0.0
        %770 = vmatprep.subr.mxu0 0.0
        %771 = vmatpush1.msra.mxu0 0.0
        %772 = vmatprep.subr.mxu0 0.0
        %773 = vmatpush1.msra.mxu0 0.0
        %774 = vmatprep.subr.mxu0 0.0
        %775 = vmatpush1.msra.mxu0 0.0
        %776 = vmatprep.subr.mxu0 0.0
        %777 = vmatpush1.msra.mxu0 0.0
        %778 = vmatprep.subr.mxu0 0.0
        %779 = vmatpush1.msra.mxu0 0.0
        %780 = vmatprep.mubr.f32.mxu0 0.0
        %781 = vmatmul.mubr.f32.gmra.mrb[0].mxu0 %v260
        %v782 = vpop.f32.mrb[0].mxu0
        %v783 = vadd.f32 0.0, %v782
        %v784 = vpop.f32.mrb[0].mxu0
        %785 = vdwg.mxu0
        %v787 = vcombine.high %v711, %v711
        %v789 = vunpack.c.l.s4 1966171168
        %v790 = vunpack.c.0.s8 %v789
        %v791 = vlaneseq
        %v792 = vshrl.u32 %v791, 7
        %v793 = vsub.s32 %v790, %v792
        %v794 = vrot.slane %v711, %v793
        %v796 = vunpack.c.l.s4 1966171168
        %v797 = vunpack.c.0.s8 %v796
        %v798 = vlaneseq
        %v799 = vshrl.u32 %v798, 7
        %v800 = vsub.s32 %v797, %v799
        %v801 = vrot.slane %v787, %v800
        %v802 = vcombine.high %v794, %v794
        %v803 = vcombine.high %v801, %v801
        %v805 = vunpack.c.l.s4 1966171168
        %v806 = vunpack.c.0.s8 %v805
        %v807 = vlaneseq
        %v808 = vshrl.u32 %v807, 7
        %v809 = vsub.s32 %v806, %v808
        %v810 = vrot.slane %v794, %v809
        %v812 = vunpack.c.l.s4 1966171168
        %v813 = vunpack.c.0.s8 %v812
        %v814 = vlaneseq
        %v815 = vshrl.u32 %v814, 7
        %v816 = vsub.s32 %v813, %v815
        %v817 = vrot.slane %v801, %v816
        %v819 = vunpack.c.l.s4 1966171168
        %v820 = vunpack.c.0.s8 %v819
        %v821 = vlaneseq
        %v822 = vshrl.u32 %v821, 7
        %v823 = vsub.s32 %v820, %v822
        %v824 = vrot.slane %v802, %v823
        %v826 = vunpack.c.l.s4 1966171168
        %v827 = vunpack.c.0.s8 %v826
        %v828 = vlaneseq
        %v829 = vshrl.u32 %v828, 7
        %v830 = vsub.s32 %v827, %v829
        %v831 = vrot.slane %v803, %v830
        %v832 = vcombine.high %v810, %v810
        %v833 = vcombine.high %v817, %v817
        %v834 = vcombine.high %v824, %v824
        %v835 = vcombine.high %v831, %v831
        %v845 = vcombine.high %v783, %v783
        %v847 = vunpack.c.l.s4 1966171168
        %v848 = vunpack.c.0.s8 %v847
        %v849 = vlaneseq
        %v850 = vshrl.u32 %v849, 7
        %v851 = vsub.s32 %v848, %v850
        %v852 = vrot.slane %v783, %v851
        %v854 = vunpack.c.l.s4 1966171168
        %v855 = vunpack.c.0.s8 %v854
        %v856 = vlaneseq
        %v857 = vshrl.u32 %v856, 7
        %v858 = vsub.s32 %v855, %v857
        %v859 = vrot.slane %v845, %v858
        %v860 = vcombine.high %v852, %v852
        %v861 = vcombine.high %v859, %v859
        %v863 = vunpack.c.l.s4 1966171168
        %v864 = vunpack.c.0.s8 %v863
        %v865 = vlaneseq
        %v866 = vshrl.u32 %v865, 7
        %v867 = vsub.s32 %v864, %v866
        %v868 = vrot.slane %v852, %v867
        %v870 = vunpack.c.l.s4 1966171168
        %v871 = vunpack.c.0.s8 %v870
        %v872 = vlaneseq
        %v873 = vshrl.u32 %v872, 7
        %v874 = vsub.s32 %v871, %v873
        %v875 = vrot.slane %v859, %v874
        %v877 = vunpack.c.l.s4 1966171168
        %v878 = vunpack.c.0.s8 %v877
        %v879 = vlaneseq
        %v880 = vshrl.u32 %v879, 7
        %v881 = vsub.s32 %v878, %v880
        %v882 = vrot.slane %v860, %v881
        %v884 = vunpack.c.l.s4 1966171168
        %v885 = vunpack.c.0.s8 %v884
        %v886 = vlaneseq
        %v887 = vshrl.u32 %v886, 7
        %v888 = vsub.s32 %v885, %v887
        %v889 = vrot.slane %v861, %v888
        %v890 = vcombine.high %v868, %v868
        %v891 = vcombine.high %v875, %v875
        %v892 = vcombine.high %v882, %v882
        %v893 = vcombine.high %v889, %v889
        %v894 = vlaneseq
        %v895 = vshrl.u32 %v894, 7
        %v896 = vsub.s32 0, %v895
        %v897 = vrot.slane %v868, %v896
        %v898 = vlaneseq
        %v899 = vshrl.u32 %v898, 7
        %v900 = vsub.s32 0, %v899
        %v901 = vrot.slane %v882, %v900
        %v902 = vlaneseq
        %v903 = vshrl.u32 %v902, 7
        %v904 = vsub.s32 0, %v903
        %v905 = vrot.slane %v890, %v904
        %v906 = vlaneseq
        %v907 = vshrl.u32 %v906, 7
        %v908 = vsub.s32 0, %v907
        %v909 = vrot.slane %v892, %v908
        %v910 = vlaneseq
        %v911 = vshrl.u32 %v910, 7
        %v912 = vsub.s32 0, %v911
        %v913 = vrot.slane %v875, %v912
        %v914 = vlaneseq
        %v915 = vshrl.u32 %v914, 7
        %v916 = vsub.s32 0, %v915
        %v917 = vrot.slane %v889, %v916
        %v918 = vlaneseq
        %v919 = vshrl.u32 %v918, 7
        %v920 = vsub.s32 0, %v919
        %v921 = vrot.slane %v891, %v920
        %v922 = vlaneseq
        %v923 = vshrl.u32 %v922, 7
        %v924 = vsub.s32 0, %v923
        %v925 = vrot.slane %v893, %v924
        %v934 = vsel %vm552, %v810, %v897
        %v935 = vsel %vm552, %v824, %v901
        %v936 = vsel %vm552, %v832, %v905
        %v937 = vsel %vm552, %v834, %v909
        %v938 = vsel %vm552, %v817, %v913
        %v939 = vsel %vm552, %v831, %v917
        %v940 = vsel %vm552, %v833, %v921
        %v941 = vsel %vm552, %v835, %v925
        %v942 = vadd.f32 %v934, %v573
        %v943 = vadd.f32 %v935, %v581
        %v944 = vadd.f32 %v936, %v580
        %v945 = vadd.f32 %v937, %v582
        %v946 = vadd.f32 %v938, %v573
        %v947 = vadd.f32 %v939, %v581
        %v948 = vadd.f32 %v940, %v580
        %v949 = vadd.f32 %v941, %v582
        %v958 = vcombine.low %v942, %v943
        %v959 = vcombine.low %v944, %v945
        %v961 = vunpack.c.l.s4 1983009808
        %v962 = vunpack.c.0.s8 %v961
        %v963 = vlaneseq
        %v964 = vshrl.u32 %v963, 7
        %v965 = vsub.s32 %v962, %v964
        %v966 = vrot.slane %v958, %v965
        %v968 = vunpack.c.l.s4 1983009808
        %v969 = vunpack.c.0.s8 %v968
        %v970 = vlaneseq
        %v971 = vshrl.u32 %v970, 7
        %v972 = vsub.s32 %v969, %v971
        %v973 = vrot.slane %v959, %v972
        %v974 = vcombine.low %v966, %v973
        %v975 = vcombine.low %v946, %v947
        %v976 = vcombine.low %v948, %v949
        %v978 = vunpack.c.l.s4 1983009808
        %v979 = vunpack.c.0.s8 %v978
        %v980 = vlaneseq
        %v981 = vshrl.u32 %v980, 7
        %v982 = vsub.s32 %v979, %v981
        %v983 = vrot.slane %v975, %v982
        %v985 = vunpack.c.l.s4 1983009808
        %v986 = vunpack.c.0.s8 %v985
        %v987 = vlaneseq
        %v988 = vshrl.u32 %v987, 7
        %v989 = vsub.s32 %v986, %v988
        %v990 = vrot.slane %v976, %v989
        %v991 = vcombine.low %v983, %v990
        %s994 = scalar_lea.vmem %s253, 16 [#allocation8]
        %995 = vst.msk [vmem:[%s994] sm:$0xff] %vm639, %v974
        %996 = vst.msk [vmem:[%s994 + $0x8] sm:$0xff] %vm639, %v991
        %s997 = sand.u32 %s132, 1
        %s998 = scalar_lea.sflag [#allocation4], %s997
        %s999 = sand.u32 %s132, 1
        %s1000 = smul.addr %s999, 32
        %s1001 = scalar_lea.vmem [#allocation8], %s1000
        // Predicated region
        $region45: #{tpu_custom_call.1} parent=31 // pred_check
          %p1002 = pneg %p142
        $region46: #{tpu_custom_call.1} parent=31 // pred_check_branch
          %1004 = sbr.rel (%p1002) target = $region48
        $region47: #{tpu_custom_call.1} parent=31 // pred_region
          %s1005 = smul.u32 2, %s27
          %s1007 = ssub.s32 512, 512
          %1008 = vsyncadd %s998, %s1007
          %s1009 = smul.addr %s1005, 2
          %s1010 = sadd.s32 %s28, %s1009
          %s1011 = smul.addr %s26, 32
          %s1012 = sadd.s32 %s1010, %s1011
          %s1013 = smul.addr %s1012, 128
          %s1014 = scalar_lea.hbm %s3, %s1013
          %s1015 = sshll.u32 %s1001, 4
          %s1016 = int_to_ptr.vmem [resolvable:$true] %s1015
          %1021 = dma.vmem_to_hbm [thread:$0]  %s1016, 512, %s1014, %s998, 128, 128, 8
        $region48: #{tpu_custom_call.1} parent=31 // pred_fallthru
          _
      $region32: #{tpu_custom_call.1} parent=5 // pred_fallthru
        _
      %p1022 = scmp.le.s32.totalorder 2, %s16
      // Predicated region
      $region49: #{tpu_custom_call.1} parent=5 // pred_check
        %p1023 = pneg %p1022
      $region50: #{tpu_custom_call.1} parent=5 // pred_check_branch
        %1025 = sbr.rel (%p1023) target = $region52
      $region51: #{tpu_custom_call.1} parent=5 // pred_region
        %s1026 = ssub.s32 %s16, 2
        // Predicated region
        $region53: #{tpu_custom_call.1} parent=51 // pred_check
          %p1027 = pneg %p148
        $region54: #{tpu_custom_call.1} parent=51 // pred_check_branch
          %1029 = sbr.rel (%p1027) target = $region56
        $region55: #{tpu_custom_call.1} parent=51 // pred_region
          %s1030 = sand.u32 %s133, 1
          %s1031 = scalar_lea.sflag [#allocation4], %s1030
          %s1032 = sand.u32 %s133, 1
          %s1033 = smul.addr %s1032, 32
          %s1034 = scalar_lea.vmem [#allocation8], %s1033
          %1035 = dma.done %s1031, 512
        $region56: #{tpu_custom_call.1} parent=51 // pred_fallthru
          _
      $region52: #{tpu_custom_call.1} parent=5 // pred_fallthru
        _
    $region6: #{tpu_custom_call.1} parent=1 // loop_footer
      %s20 = sadd.s32 1, %s16
    $region7: #{tpu_custom_call.1} parent=1 // loop_footer_branch
      %15 = sbr.rel target = $region3
    $region8: #{tpu_custom_call.1} parent=1 // loop_exit
      _
    %1036 = vsyncpa [#allocation3], 1
    %s1037 = scalar_lea.sflag [#allocation3], 1
    %1038 = vsyncpa %s1037, 1
    %1039 = vsyncpa [#allocation6], 1
    %1040 = vsyncpa [#allocation4], 1
    %s1041 = scalar_lea.sflag [#allocation4], 1
    %1042 = vsyncpa %s1041, 1

</llo_original>
